<compile_context>
chip_gen: v5e
topology: v5e:2x2
jax: 0.10.0
libtpu: 0.0.40
codegen_flags: <defaults>
</compile_context>

<pallas_src>
import jax
import jax.numpy as jnp
from jax.experimental import pallas as pl
from jax.experimental.pallas import tpu as pltpu


def pill_kernel(x_ref, wc_ref, bc_ref, wh_ref, bh_ref, out_ref, acc_ref):
    """Grid = (B, HW_tiles); one batch element per b, HW tiled on the lane axis.

    x_ref  : [1, C, T]     activation tile (channels-first, HW on lanes)
    wc_ref : [F, C]        pointwise-conv weight (transposed)
    bc_ref : [F, 1]        conv bias
    wh_ref : [F, Npad]     fused (imprint|primary|secondary|shape) head weights,
                           1/(H*W) pool scale folded in, zero-padded to 128 lanes
    bh_ref : [1, Npad]     fused head bias (zero-padded)
    out_ref: [1, 1, Npad]  fused logits for this batch element
    acc_ref: [F, 1]        pooled-sum accumulator (f32 scratch across HW tiles)
    """
    h = pl.program_id(1)

    @pl.when(h == 0)
    def _():
        acc_ref[...] = jnp.zeros_like(acc_ref)

    # ---- backbone: pointwise conv + ReLU on the VPU -------------------------
    # Contraction depth C is tiny (3), so the MXU would be <6% utilized; a few
    # broadcast FMAs per vreg do the same work with no channel padding.
    x = x_ref[0]                                     # [C, T]
    C = x.shape[0]
    feat = wc_ref[:, 0:1] * x[0:1, :]                # [F, 1]*[1, T] -> [F, T]
    for c in range(1, C):                            # static, tiny channel loop
        feat = feat + wc_ref[:, c:c + 1] * x[c:c + 1, :]
    feat = jnp.maximum(feat + bc_ref[...], 0.0)      # bias + ReLU, lane-dense

    # ---- partial global average pool (scale folded into head weights) -------
    acc_ref[...] += jnp.sum(feat, axis=1, keepdims=True)   # lane reduce -> [F, 1]

    # ---- fused heads: one lane-dense 128-wide output -------------------------
    @pl.when(h == pl.num_programs(1) - 1)
    def _():
        pooled = acc_ref[...]                                          # [F, 1]
        logits = jnp.sum(pooled * wh_ref[...], axis=0, keepdims=True)  # [1, Npad]
        out_ref[0] = logits + bh_ref[...]


def multi_task_pill_forward(x_nchw, params):
    """x_nchw: [B, C, H, W] float32. Returns (imprint, primary, secondary, shape) logits."""
    B, C, H, W = x_nchw.shape
    HW = H * W
    F = params["wc"].shape[1]

    # NCHW -> [B, C, H*W]: pure reshape, no transpose / pad materialization.
    x = x_nchw.reshape(B, C, HW)

    wc_t = jnp.transpose(params["wc"])               # [F, C]
    bc = params["bc"].reshape(F, 1)

    # Fuse the four heads into one matrix, fold in the 1/(H*W) pool scale,
    # and zero-pad the output axis to a lane-dense multiple of 128.
    head_keys = (("wi", "bi"), ("wp", "bp"), ("ws", "bs"), ("wsh", "bsh"))
    sizes = [params[w].shape[1] for w, _ in head_keys]
    n_total = sum(sizes)
    n_pad = pl.cdiv(n_total, 128) * 128
    wh = jnp.concatenate([params[w] for w, _ in head_keys], axis=1) / float(HW)
    wh = jnp.pad(wh, ((0, 0), (0, n_pad - n_total)))             # [F, Npad]
    bh = jnp.concatenate([params[b] for _, b in head_keys]).reshape(1, -1)
    bh = jnp.pad(bh, ((0, 0), (0, n_pad - n_total)))             # [1, Npad]

    # HW tile on the lane axis (128-wide when possible); pooled sum lives in
    # a VMEM scratch, so large H*W pipelines instead of blowing VMEM.
    t_hw = 128 if HW % 128 == 0 else HW
    grid = (B, HW // t_hw)

    fused = pl.pallas_call(
        pill_kernel,
        out_shape=jax.ShapeDtypeStruct((B, 1, n_pad), jnp.float32),
        grid_spec=pltpu.PrefetchScalarGridSpec(
            num_scalar_prefetch=0,
            grid=grid,
            in_specs=[
                pl.BlockSpec((1, C, t_hw), lambda b, h: (b, 0, h)),
                pl.BlockSpec((F, C), lambda b, h: (0, 0)),
                pl.BlockSpec((F, 1), lambda b, h: (0, 0)),
                pl.BlockSpec((F, n_pad), lambda b, h: (0, 0)),
                pl.BlockSpec((1, n_pad), lambda b, h: (0, 0)),
            ],
            out_specs=pl.BlockSpec((1, 1, n_pad), lambda b, h: (b, 0, 0)),
            scratch_shapes=[pltpu.VMEM((F, 1), jnp.float32)],
        ),
        compiler_params=pltpu.CompilerParams(
            dimension_semantics=("parallel", "arbitrary")),
    )(x, wc_t, bc, wh, bh)

    # Slice the fused 128-lane output back into the four head logits.
    fused = fused.reshape(B, n_pad)
    offs = [0]
    for s in sizes:
        offs.append(offs[-1] + s)
    return tuple(fused[:, offs[i]:offs[i + 1]] for i in range(4))


def _reference_forward(x_nchw, params):
    B, C, H, W = x_nchw.shape
    xcl = jnp.transpose(x_nchw, (0, 2, 3, 1)).reshape(B, H * W, C)
    feat = jnp.maximum(jnp.einsum("bpc,cf->bpf", xcl, params["wc"]) + params["bc"], 0.0)
    pooled = jnp.mean(feat, axis=1)
    heads = []
    for w, b in (("wi", "bi"), ("wp", "bp"), ("ws", "bs"), ("wsh", "bsh")):
        heads.append(pooled @ params[w] + params[b])
    return tuple(heads)


if __name__ == "__main__":
    # Small shapes consistent with the module's forward.
    B, C, H, W = 2, 3, 16, 16
    F = 32                      # backbone feature dim (avgpool_output_size)
    NUM_IMPRINTS = 10
    NUM_PRIMARY = 6
    NUM_SECONDARY = 6
    NUM_SHAPES = 4

    key = jax.random.PRNGKey(0)
    ks = jax.random.split(key, 12)

    params = {
        "wc":  0.1 * jax.random.normal(ks[0], (C, F), jnp.float32),
        "bc":  0.1 * jax.random.normal(ks[1], (F,), jnp.float32),
        "wi":  0.1 * jax.random.normal(ks[2], (F, NUM_IMPRINTS), jnp.float32),
        "bi":  0.1 * jax.random.normal(ks[3], (NUM_IMPRINTS,), jnp.float32),
        "wp":  0.1 * jax.random.normal(ks[4], (F, NUM_PRIMARY), jnp.float32),
        "bp":  0.1 * jax.random.normal(ks[5], (NUM_PRIMARY,), jnp.float32),
        "ws":  0.1 * jax.random.normal(ks[6], (F, NUM_SECONDARY), jnp.float32),
        "bs":  0.1 * jax.random.normal(ks[7], (NUM_SECONDARY,), jnp.float32),
        "wsh": 0.1 * jax.random.normal(ks[8], (F, NUM_SHAPES), jnp.float32),
        "bsh": 0.1 * jax.random.normal(ks[9], (NUM_SHAPES,), jnp.float32),
    }

    x = jax.random.normal(ks[10], (B, C, H, W), jnp.float32)

    outs = multi_task_pill_forward(x, params)
    outs = jax.block_until_ready(outs)

    refs = _reference_forward(x, params)
    for o, r in zip(outs, refs):
        assert o.shape == r.shape
        assert jnp.allclose(o, r, atol=1e-4, rtol=1e-4)

    print("KERNEL_OK")
</pallas_src>

<mosaic_0001>
module attributes {stable_mosaic.version = 11 : i64} {
  func.func @pill_kernel(%arg0: i32, %arg1: i32, %arg2: memref<1x3x128xf32, #tpu.memory_space<vmem>>, %arg3: memref<32x3xf32, #tpu.memory_space<vmem>>, %arg4: memref<32x1xf32, #tpu.memory_space<vmem>>, %arg5: memref<32x128xf32, #tpu.memory_space<vmem>>, %arg6: memref<1x128xf32, #tpu.memory_space<vmem>>, %arg7: memref<1x1x128xf32, #tpu.memory_space<vmem>>, %arg8: memref<32x1xf32, #tpu.memory_space<vmem>>) attributes {dimension_semantics = [#tpu.dimension_semantics<parallel>, #tpu.dimension_semantics<arbitrary>], iteration_bounds = array<i64: 2, 2>, scalar_prefetch = 0 : i64, scratch_operands = 1 : i64, tpu.core_type = #tpu.core_type<tc>, window_params = [{transform_indices = @transform_0, window_bounds = array<i64: 1, 3, 128>}, {pipeline_mode = #tpu.pipeline_mode<synchronous>, transform_indices = @transform_1, window_bounds = array<i64: 32, 3>}, {pipeline_mode = #tpu.pipeline_mode<synchronous>, transform_indices = @transform_2, window_bounds = array<i64: 32, 1>}, {pipeline_mode = #tpu.pipeline_mode<synchronous>, transform_indices = @transform_3, window_bounds = array<i64: 32, 128>}, {pipeline_mode = #tpu.pipeline_mode<synchronous>, transform_indices = @transform_4, window_bounds = array<i64: 1, 128>}, {transform_indices = @transform_5, window_bounds = array<i64: 1, 1, 128>}]} {
    %c0_i32 = arith.constant 0 : i32
    %0 = arith.cmpi eq, %arg1, %c0_i32 : i32
    %1 = arith.extui %0 : i1 to i32
    %c0_i32_0 = arith.constant 0 : i32
    %2 = arith.cmpi ne, %1, %c0_i32_0 : i32
    scf.if %2 {
      %cst_15 = arith.constant 0.000000e+00 : f32
      %35 = vector.broadcast %cst_15 : f32 to vector<32x1xf32>
      %c0_16 = arith.constant 0 : index
      %c0_17 = arith.constant 0 : index
      %36 = vector.load %arg8[%c0_16, %c0_17] : memref<32x1xf32, #tpu.memory_space<vmem>>, vector<32x1xf32>
      tpu.vector_store %arg8[%c0_16, %c0_17], %35 {strides = array<i32>} : memref<32x1xf32, #tpu.memory_space<vmem>>, vector<32x1xf32>,
    } else {
    }
    %c0 = arith.constant 0 : index
    %c0_1 = arith.constant 0 : index
    %c0_2 = arith.constant 0 : index
    %3 = vector.load %arg2[%c0, %c0_1, %c0_2] : memref<1x3x128xf32, #tpu.memory_space<vmem>>, vector<1x3x128xf32>
    %4 = vector.shape_cast %3 : vector<1x3x128xf32> to vector<3x128xf32>
    %c0_3 = arith.constant 0 : index
    %c0_4 = arith.constant 0 : index
    %5 = vector.load %arg3[%c0_3, %c0_4] : memref<32x3xf32, #tpu.memory_space<vmem>>, vector<32x1xf32>
    %6 = vector.extract_strided_slice %4 {offsets = [0, 0], sizes = [1, 128], strides = [1, 1]} : vector<3x128xf32> to vector<1x128xf32>
    %7 = vector.broadcast %5 : vector<32x1xf32> to vector<32x128xf32>
    %8 = vector.broadcast %6 : vector<1x128xf32> to vector<32x128xf32>
    %9 = arith.mulf %7, %8 : vector<32x128xf32>
    %c0_5 = arith.constant 0 : index
    %c1 = arith.constant 1 : index
    %10 = vector.load %arg3[%c0_5, %c1] : memref<32x3xf32, #tpu.memory_space<vmem>>, vector<32x1xf32>
    %11 = vector.extract_strided_slice %4 {offsets = [1, 0], sizes = [1, 128], strides = [1, 1]} : vector<3x128xf32> to vector<1x128xf32>
    %12 = vector.broadcast %10 : vector<32x1xf32> to vector<32x128xf32>
    %13 = vector.broadcast %11 : vector<1x128xf32> to vector<32x128xf32>
    %14 = arith.mulf %12, %13 : vector<32x128xf32>
    %15 = arith.addf %9, %14 : vector<32x128xf32>
    %c0_6 = arith.constant 0 : index
    %c2 = arith.constant 2 : index
    %16 = vector.load %arg3[%c0_6, %c2] : memref<32x3xf32, #tpu.memory_space<vmem>>, vector<32x1xf32>
    %17 = vector.extract_strided_slice %4 {offsets = [2, 0], sizes = [1, 128], strides = [1, 1]} : vector<3x128xf32> to vector<1x128xf32>
    %18 = vector.broadcast %16 : vector<32x1xf32> to vector<32x128xf32>
    %19 = vector.broadcast %17 : vector<1x128xf32> to vector<32x128xf32>
    %20 = arith.mulf %18, %19 : vector<32x128xf32>
    %21 = arith.addf %15, %20 : vector<32x128xf32>
    %c0_7 = arith.constant 0 : index
    %c0_8 = arith.constant 0 : index
    %22 = vector.load %arg4[%c0_7, %c0_8] : memref<32x1xf32, #tpu.memory_space<vmem>>, vector<32x1xf32>
    %23 = vector.broadcast %22 : vector<32x1xf32> to vector<32x128xf32>
    %24 = arith.addf %21, %23 : vector<32x128xf32>
    %cst = arith.constant 0.000000e+00 : f32
    %25 = vector.broadcast %cst : f32 to vector<32x128xf32>
    %26 = arith.maximumf %24, %25 : vector<32x128xf32>
    %c0_9 = arith.constant 0 : index
    %c0_10 = arith.constant 0 : index
    %27 = vector.load %arg8[%c0_9, %c0_10] : memref<32x1xf32, #tpu.memory_space<vmem>>, vector<32x1xf32>
    %cst_11 = arith.constant dense<0.000000e+00> : vector<32xf32>
    %28 = vector.multi_reduction <add>, %26, %cst_11 [1] : vector<32x128xf32> to vector<32xf32>
    %29 = vector.shape_cast %28 : vector<32xf32> to vector<32x1xf32>
    %30 = arith.addf %27, %29 : vector<32x1xf32>
    %c0_12 = arith.constant 0 : index
    %c0_13 = arith.constant 0 : index
    %31 = vector.load %arg8[%c0_12, %c0_13] : memref<32x1xf32, #tpu.memory_space<vmem>>, vector<32x1xf32>
    tpu.vector_store %arg8[%c0_12, %c0_13], %30 {strides = array<i32>} : memref<32x1xf32, #tpu.memory_space<vmem>>, vector<32x1xf32>,
    %c1_i32 = arith.constant 1 : i32
    %32 = arith.cmpi eq, %arg1, %c1_i32 : i32
    %33 = arith.extui %32 : i1 to i32
    %c0_i32_14 = arith.constant 0 : i32
    %34 = arith.cmpi ne, %33, %c0_i32_14 : i32
    scf.if %34 {
      %c0_15 = arith.constant 0 : index
      %c0_16 = arith.constant 0 : index
      %35 = vector.load %arg8[%c0_15, %c0_16] : memref<32x1xf32, #tpu.memory_space<vmem>>, vector<32x1xf32>
      %c0_17 = arith.constant 0 : index
      %c0_18 = arith.constant 0 : index
      %36 = vector.load %arg5[%c0_17, %c0_18] : memref<32x128xf32, #tpu.memory_space<vmem>>, vector<32x128xf32>
      %37 = vector.broadcast %35 : vector<32x1xf32> to vector<32x128xf32>
      %38 = arith.mulf %37, %36 : vector<32x128xf32>
      %cst_19 = arith.constant dense<0.000000e+00> : vector<128xf32>
      %39 = vector.multi_reduction <add>, %38, %cst_19 [0] : vector<32x128xf32> to vector<128xf32>
      %40 = vector.shape_cast %39 : vector<128xf32> to vector<1x128xf32>
      %c0_20 = arith.constant 0 : index
      %c0_21 = arith.constant 0 : index
      %41 = vector.load %arg6[%c0_20, %c0_21] : memref<1x128xf32, #tpu.memory_space<vmem>>, vector<1x128xf32>
      %42 = arith.addf %40, %41 : vector<1x128xf32>
      %c0_22 = arith.constant 0 : index
      %c0_23 = arith.constant 0 : index
      %c0_24 = arith.constant 0 : index
      %43 = vector.load %arg7[%c0_22, %c0_23, %c0_24] : memref<1x1x128xf32, #tpu.memory_space<vmem>>, vector<1x1x128xf32>
      %44 = vector.shape_cast %43 : vector<1x1x128xf32> to vector<1x128xf32>
      %45 = vector.shape_cast %42 : vector<1x128xf32> to vector<1x1x128xf32>
      tpu.vector_store %arg7[%c0_22, %c0_23, %c0_24], %45 {strides = array<i32>} : memref<1x1x128xf32, #tpu.memory_space<vmem>>, vector<1x1x128xf32>,
    } else {
    }
    return
  }
  func.func @transform_0(%arg0: i32, %arg1: i32) -> (i32, i32, i32) {
    %c0_i32 = arith.constant 0 : i32
    %c0_i32_0 = arith.constant 0 : i32
    return %arg0, %c0_i32, %arg1 : i32, i32, i32
  }
  func.func @transform_1(%arg0: i32, %arg1: i32) -> (i32, i32) {
    %c0_i32 = arith.constant 0 : i32
    %c0_i32_0 = arith.constant 0 : i32
    %c0_i32_1 = arith.constant 0 : i32
    return %c0_i32, %c0_i32_0 : i32, i32
  }
  func.func @transform_2(%arg0: i32, %arg1: i32) -> (i32, i32) {
    %c0_i32 = arith.constant 0 : i32
    %c0_i32_0 = arith.constant 0 : i32
    %c0_i32_1 = arith.constant 0 : i32
    return %c0_i32, %c0_i32_0 : i32, i32
  }
  func.func @transform_3(%arg0: i32, %arg1: i32) -> (i32, i32) {
    %c0_i32 = arith.constant 0 : i32
    %c0_i32_0 = arith.constant 0 : i32
    %c0_i32_1 = arith.constant 0 : i32
    return %c0_i32, %c0_i32_0 : i32, i32
  }
  func.func @transform_4(%arg0: i32, %arg1: i32) -> (i32, i32) {
    %c0_i32 = arith.constant 0 : i32
    %c0_i32_0 = arith.constant 0 : i32
    %c0_i32_1 = arith.constant 0 : i32
    return %c0_i32, %c0_i32_0 : i32, i32
  }
  func.func @transform_5(%arg0: i32, %arg1: i32) -> (i32, i32, i32) {
    %c0_i32 = arith.constant 0 : i32
    %c0_i32_0 = arith.constant 0 : i32
    %c0_i32_1 = arith.constant 0 : i32
    return %arg0, %c0_i32, %c0_i32_0 : i32, i32, i32
  }
}

</mosaic_0001>

<llo_original>
// kernel: tpu_custom_call.1
$region0: #{tpu_custom_call.1}
  #allocation0 [shape = 'u32[]', space=smem, size = 0x4, offset = 0x4, fixed_abs, tag = 'smem constant byte address 0x4 - core index']
  #allocation1 [shape = 'u32[72,128]{1,0:T(1,128)}', space=vmem, size = 0x9000, scoped, tag = 'internal scratch']
  #allocation2 [shape = 'f32[32,1]{1,0:T(8,128)}', space=vmem, size = 0x4000, scoped, tag = 'scratch operand']
  %s0 = inlined_call_operand.vmem [shape: f32[2,3,256], index: 0, kind: input, shape index: {}]
  %s1 = inlined_call_operand.vmem [shape: f32[32,3], index: 1, kind: input, shape index: {}]
  %s2 = inlined_call_operand.vmem [shape: f32[32,1], index: 2, kind: input, shape index: {}]
  %s3 = inlined_call_operand.vmem [shape: f32[32,128], index: 3, kind: input, shape index: {}]
  %s4 = inlined_call_operand.vmem [shape: f32[1,128], index: 4, kind: input, shape index: {}]
  %s5 = inlined_call_operand.hbm [shape: f32[2,1,128], index: 5, kind: output, shape index: {}]
  %s6 = sld [smem:[#allocation0]]
  $region61: #{tpu_custom_call.1} parent=0
    _
  %s8 = ssub.s32 1, %s6
  %s9 = scalar_select 0, %s8, %s6
  $region1: #{tpu_custom_call.1} parent=0
    #allocation3 [shape = 'u8[1024]{0}', space=vmem, size = 0x400, scoped, tag = 'output window, operand 0']
    #allocation4 [shape = 's32[2]{0}', space=sflag, size = 0x8, scoped, tag = 'scoped memory for tpu_custom_call.1']
    %10 = vsyncpa [#allocation4], 0
    %s11 = scalar_lea.sflag [#allocation4], 1
    %12 = vsyncpa %s11, 0
    loop: start=0, step=1, limit=6
    $region2: #{tpu_custom_call.1} parent=1 // loop_pre_header
      _
    $region3: #{tpu_custom_call.1} parent=1 // loop_header
      %s14 = sphi 0, %s18
      %p15 = scmp.ge.s32.totalorder %s14, 6
      %s21 = sphi 0, %s33
      %s22 = sphi 0, %s29
      %s23 = sphi 0, %s21
      %s24 = sphi 0, %s22
      %s25 = sphi 0, %s23
      %s26 = sphi 0, %s24
      %s38 = sphi 0, %s40
      %s41 = sphi 0, %s38
      %s42 = sphi 0, %s41
      %s58 = sphi 0, %s42
      %s62 = sphi 0, %s62
      %s64 = sphi 0, %s62
      %s65 = sphi 0, %s64
      %s79 = sphi 0, %s65
      %s83 = sphi 0, %s83
      %s85 = sphi 0, %s83
      %s86 = sphi 0, %s85
      %s100 = sphi 0, %s86
      %s104 = sphi 0, %s104
      %s106 = sphi 0, %s104
      %s107 = sphi 0, %s106
      %s121 = sphi 0, %s107
      %s125 = sphi 0, %s125
      %s127 = sphi 0, %s125
      %s128 = sphi 0, %s127
      %s142 = sphi 0, %s128
      %s148 = sphi 0, %s150
      %s151 = sphi 0, %s148
      %s152 = sphi 0, %s151
      %s168 = sphi 0, %s152
    $region4: #{tpu_custom_call.1} parent=1 // loop_header_branch
      %17 = sbr.rel (%p15) target = $region8
    $region5: #{tpu_custom_call.1} parent=1 // loop_body
      %s19 = ssub.s32 %s14, 1
      %s20 = ssub.s32 %s14, 2
      %s27 = sadd.s32 1, %s22
      %p28 = scmp.ge.s32.totalorder %s27, 2
      %s29 = scalar_select %p28, 0, %s27
      %s30 = sadd.s32 1, %s21
      %s31 = scalar_select %p28, %s30, %s21
      %p32 = scmp.ge.s32.totalorder %s31, 2
      %s33 = scalar_select %p32, 0, %s31
      %s34 = ssub.s32 %s21, %s33
      %s35 = ssub.s32 %s22, %s29
      %s36 = sor.u32 %s34, %s35
      %p37 = scmp.eq.s32.totalorder %s36, 0
      %s39 = sadd.s32 %s38, 1
      %s40 = scalar_select %p37, %s38, %s39
      %p43 = pneg %p37
      %p44 = scmp.eq.s32.totalorder %s14, 3
      %p45 = por %p43, %p44
      %p46 = scmp.ne.s32.totalorder %s38, %s41
      %p47 = scmp.eq.s32.totalorder %s14, 0
      %p48 = por %p46, %p47
      %p49 = scmp.ne.s32.totalorder %s38, %s41
      %p50 = scmp.eq.s32.totalorder %s19, 3
      %p51 = por %p49, %p50
      %p52 = scmp.ne.s32.totalorder %s41, %s42
      %p53 = scmp.eq.s32.totalorder %s19, 0
      %p54 = por %p52, %p53
      %p55 = scmp.ne.s32.totalorder %s41, %s42
      %p56 = scmp.eq.s32.totalorder %s20, 3
      %p57 = por %p55, %p56
      %p59 = scmp.ne.s32.totalorder %s42, %s58
      %p60 = scmp.eq.s32.totalorder %s20, 0
      %p61 = por %p59, %p60
      %s63 = sadd.s32 %s62, 1
      %p66 = scmp.eq.s32.totalorder %s14, 3
      %p67 = scmp.ne.s32.totalorder %s62, %s64
      %p68 = scmp.eq.s32.totalorder %s14, 0
      %p69 = por %p67, %p68
      %p70 = scmp.ne.s32.totalorder %s62, %s64
      %p71 = scmp.eq.s32.totalorder %s19, 3
      %p72 = por %p70, %p71
      %p73 = scmp.ne.s32.totalorder %s64, %s65
      %p74 = scmp.eq.s32.totalorder %s19, 0
      %p75 = por %p73, %p74
      %p76 = scmp.ne.s32.totalorder %s64, %s65
      %p77 = scmp.eq.s32.totalorder %s20, 3
      %p78 = por %p76, %p77
      %p80 = scmp.ne.s32.totalorder %s65, %s79
      %p81 = scmp.eq.s32.totalorder %s20, 0
      %p82 = por %p80, %p81
      %s84 = sadd.s32 %s83, 1
      %p87 = scmp.eq.s32.totalorder %s14, 3
      %p88 = scmp.ne.s32.totalorder %s83, %s85
      %p89 = scmp.eq.s32.totalorder %s14, 0
      %p90 = por %p88, %p89
      %p91 = scmp.ne.s32.totalorder %s83, %s85
      %p92 = scmp.eq.s32.totalorder %s19, 3
      %p93 = por %p91, %p92
      %p94 = scmp.ne.s32.totalorder %s85, %s86
      %p95 = scmp.eq.s32.totalorder %s19, 0
      %p96 = por %p94, %p95
      %p97 = scmp.ne.s32.totalorder %s85, %s86
      %p98 = scmp.eq.s32.totalorder %s20, 3
      %p99 = por %p97, %p98
      %p101 = scmp.ne.s32.totalorder %s86, %s100
      %p102 = scmp.eq.s32.totalorder %s20, 0
      %p103 = por %p101, %p102
      %s105 = sadd.s32 %s104, 1
      %p108 = scmp.eq.s32.totalorder %s14, 3
      %p109 = scmp.ne.s32.totalorder %s104, %s106
      %p110 = scmp.eq.s32.totalorder %s14, 0
      %p111 = por %p109, %p110
      %p112 = scmp.ne.s32.totalorder %s104, %s106
      %p113 = scmp.eq.s32.totalorder %s19, 3
      %p114 = por %p112, %p113
      %p115 = scmp.ne.s32.totalorder %s106, %s107
      %p116 = scmp.eq.s32.totalorder %s19, 0
      %p117 = por %p115, %p116
      %p118 = scmp.ne.s32.totalorder %s106, %s107
      %p119 = scmp.eq.s32.totalorder %s20, 3
      %p120 = por %p118, %p119
      %p122 = scmp.ne.s32.totalorder %s107, %s121
      %p123 = scmp.eq.s32.totalorder %s20, 0
      %p124 = por %p122, %p123
      %s126 = sadd.s32 %s125, 1
      %p129 = scmp.eq.s32.totalorder %s14, 3
      %p130 = scmp.ne.s32.totalorder %s125, %s127
      %p131 = scmp.eq.s32.totalorder %s14, 0
      %p132 = por %p130, %p131
      %p133 = scmp.ne.s32.totalorder %s125, %s127
      %p134 = scmp.eq.s32.totalorder %s19, 3
      %p135 = por %p133, %p134
      %p136 = scmp.ne.s32.totalorder %s127, %s128
      %p137 = scmp.eq.s32.totalorder %s19, 0
      %p138 = por %p136, %p137
      %p139 = scmp.ne.s32.totalorder %s127, %s128
      %p140 = scmp.eq.s32.totalorder %s20, 3
      %p141 = por %p139, %p140
      %p143 = scmp.ne.s32.totalorder %s128, %s142
      %p144 = scmp.eq.s32.totalorder %s20, 0
      %p145 = por %p143, %p144
      %s146 = ssub.s32 %s21, %s33
      %p147 = scmp.eq.s32.totalorder %s146, 0
      %s149 = sadd.s32 %s148, 1
      %s150 = scalar_select %p147, %s148, %s149
      %p153 = pneg %p147
      %p154 = scmp.eq.s32.totalorder %s14, 3
      %p155 = por %p153, %p154
      %p156 = scmp.ne.s32.totalorder %s148, %s151
      %p157 = scmp.eq.s32.totalorder %s14, 0
      %p158 = por %p156, %p157
      %p159 = scmp.ne.s32.totalorder %s148, %s151
      %p160 = scmp.eq.s32.totalorder %s19, 3
      %p161 = por %p159, %p160
      %p162 = scmp.ne.s32.totalorder %s151, %s152
      %p163 = scmp.eq.s32.totalorder %s19, 0
      %p164 = por %p162, %p163
      %p165 = scmp.ne.s32.totalorder %s151, %s152
      %p166 = scmp.eq.s32.totalorder %s20, 3
      %p167 = por %p165, %p166
      %p169 = scmp.ne.s32.totalorder %s152, %s168
      %p170 = scmp.eq.s32.totalorder %s20, 0
      %p171 = por %p169, %p170
      %p172 = scmp.le.s32.totalorder 1, %s14
      %p173 = scmp.lt.s32.totalorder %s14, 5
      %p174 = pnand %p172, %p173
      %p175 = pneg %p174
      // Predicated region
      $region9: #{tpu_custom_call.1} parent=5 // pred_check
        _
      $region10: #{tpu_custom_call.1} parent=5 // pred_check_branch
        %177 = sbr.rel (%p174) target = $region12
      $region11: #{tpu_custom_call.1} parent=5 // pred_region
        %s178 = ssub.s32 %s14, 1
        // Predicated region
        $region13: #{tpu_custom_call.1} parent=11 // pred_check
          %p179 = pneg %p75
        $region14: #{tpu_custom_call.1} parent=11 // pred_check_branch
          %181 = sbr.rel (%p179) target = $region16
        $region15: #{tpu_custom_call.1} parent=11 // pred_region
          _
        $region16: #{tpu_custom_call.1} parent=11 // pred_fallthru
          _
        // Predicated region
        $region17: #{tpu_custom_call.1} parent=11 // pred_check
          %p182 = pneg %p96
        $region18: #{tpu_custom_call.1} parent=11 // pred_check_branch
          %184 = sbr.rel (%p182) target = $region20
        $region19: #{tpu_custom_call.1} parent=11 // pred_region
          _
        $region20: #{tpu_custom_call.1} parent=11 // pred_fallthru
          _
        // Predicated region
        $region21: #{tpu_custom_call.1} parent=11 // pred_check
          %p185 = pneg %p117
        $region22: #{tpu_custom_call.1} parent=11 // pred_check_branch
          %187 = sbr.rel (%p185) target = $region24
        $region23: #{tpu_custom_call.1} parent=11 // pred_region
          _
        $region24: #{tpu_custom_call.1} parent=11 // pred_fallthru
          _
        // Predicated region
        $region25: #{tpu_custom_call.1} parent=11 // pred_check
          %p188 = pneg %p138
        $region26: #{tpu_custom_call.1} parent=11 // pred_check_branch
          %190 = sbr.rel (%p188) target = $region28
        $region27: #{tpu_custom_call.1} parent=11 // pred_region
          _
        $region28: #{tpu_custom_call.1} parent=11 // pred_fallthru
          _
      $region12: #{tpu_custom_call.1} parent=5 // pred_fallthru
        _
      %p191 = scmp.lt.s32.totalorder %s14, 4
      // Predicated region
      $region29: #{tpu_custom_call.1} parent=5 // pred_check
        %p192 = pneg %p191
      $region30: #{tpu_custom_call.1} parent=5 // pred_check_branch
        %194 = sbr.rel (%p192) target = $region32
      $region31: #{tpu_custom_call.1} parent=5 // pred_region
        // Predicated region
        $region33: #{tpu_custom_call.1} parent=31 // pred_check
          %p195 = pneg %p48
        $region34: #{tpu_custom_call.1} parent=31 // pred_check_branch
          %197 = sbr.rel (%p195) target = $region36
        $region35: #{tpu_custom_call.1} parent=31 // pred_region
          %p198 = scmp.lt.s32.totalorder %s21, 1
          %s199 = scalar_select %p198, %s21, 1
          %p200 = scmp.lt.s32.totalorder %s22, 1
          %s201 = scalar_select %p200, %s22, 1
          %s202 = smul.addr %s199, 2
          %s203 = sadd.s32 %s201, %s202
          %s204 = smul.addr %s203, 4
          %s205 = scalar_lea.vmem %s0, %s204
        $region36: #{tpu_custom_call.1} parent=31 // pred_fallthru
          _
      $region32: #{tpu_custom_call.1} parent=5 // pred_fallthru
        _
      %p206 = scmp.le.s32.totalorder 1, %s14
      %p207 = scmp.lt.s32.totalorder %s14, 5
      %p208 = pnand %p206, %p207
      %p209 = pneg %p208
      // Predicated region
      $region37: #{tpu_custom_call.1} parent=5 // pred_check
        _
      $region38: #{tpu_custom_call.1} parent=5 // pred_check_branch
        %211 = sbr.rel (%p208) target = $region40
      $region39: #{tpu_custom_call.1} parent=5 // pred_region
        %s212 = ssub.s32 %s14, 1
        %p213 = scmp.lt.s32.totalorder %s23, 1
        %s214 = scalar_select %p213, %s23, 1
        %p215 = scmp.lt.s32.totalorder %s24, 1
        %s216 = scalar_select %p215, %s24, 1
        %s217 = smul.addr %s214, 2
        %s218 = sadd.s32 %s216, %s217
        %s219 = smul.addr %s218, 4
        %s220 = scalar_lea.vmem %s0, %s219
        %p221 = pneg %p54
        %p222 = pneg %p51
        %p223 = pneg %p75
        %p224 = pneg %p72
        %p225 = pneg %p96
        %p226 = pneg %p93
        %p227 = pneg %p117
        %p228 = pneg %p114
        %p229 = pneg %p138
        %p230 = pneg %p135
        %p231 = pneg %p164
        %p232 = pneg %p161
        %s233 = sand.u32 %s151, 1
        %s234 = scalar_lea.sflag [#allocation4], %s233
        %s235 = sand.u32 %s151, 1
        %s236 = scalar_lea.vmem [#allocation3], %s235
        %p237 = scmp.lt.s32.totalorder %s23, 1
        %s238 = scalar_select %p237, %s23, 1
        %p239 = scmp.lt.s32.totalorder %s24, 1
        %s240 = scalar_select %p239, %s24, 1
        %s241 = smul.addr %s238, 2
        %s242 = sadd.s32 %s240, %s241
        %s243 = smul.addr %s242, 4
        %s244 = scalar_lea.vmem %s0, %s243
        %p245 = scmp.eq.s32.totalorder %s24, 0
        // Predicated region
        $region41: #{tpu_custom_call.1} parent=39 // pred_check
          %p246 = pneg %p245
        $region42: #{tpu_custom_call.1} parent=39 // pred_check_branch
          %248 = sbr.rel (%p246) target = $region44
        $region43: #{tpu_custom_call.1} parent=39 // pred_region
          %vm249 = vcmask 7168
          %250 = vst.msk [vmem:[#allocation2] sm:$0xff] %vm249, 0.0
          %251 = vst.msk [vmem:[#allocation2 + $0x8] sm:$0xff] %vm249, 0.0
          %252 = vst.msk [vmem:[#allocation2 + $0x10] sm:$0xff] %vm249, 0.0
          %253 = vst.msk [vmem:[#allocation2 + $0x18] sm:$0xff] %vm249, 0.0
        $region44: #{tpu_custom_call.1} parent=39 // pred_fallthru
          _
        %v254 = vld [vmem:[%s244] sm:$0x7]
        %v255 = vld [vmem:[%s1] sm:$0xff]
        %v256 = vld [vmem:[%s1 + $0x8] sm:$0xff]
        %v257 = vld [vmem:[%s1 + $0x10] sm:$0xff]
        %v258 = vld [vmem:[%s1 + $0x18] sm:$0xff]
        %260 = vset.pattern.permute.xlu0 0
        %261 = vperm.xlu0 %260, %v255
        %v262 = vpop.permute.xlu0 %261
        %265 = vset.pattern.permute.xlu0 0
        %266 = vperm.xlu0 %265, %v256
        %v267 = vpop.permute.xlu0 %266
        %270 = vset.pattern.permute.xlu0 0
        %271 = vperm.xlu0 %270, %v257
        %v272 = vpop.permute.xlu0 %271
        %275 = vset.pattern.permute.xlu0 0
        %276 = vperm.xlu0 %275, %v258
        %v277 = vpop.permute.xlu0 %276
        %v279 = vperm.slane %v254, 0
        %v280 = vmul.f32 %v262, %v279
        %v281 = vmul.f32 %v267, %v279
        %v282 = vmul.f32 %v272, %v279
        %v283 = vmul.f32 %v277, %v279
        %284 = vset.pattern.permute.xlu0 1
        %285 = vperm.xlu0 %284, %v255
        %v286 = vpop.permute.xlu0 %285
        %288 = vset.pattern.permute.xlu0 1
        %289 = vperm.xlu0 %288, %v256
        %v290 = vpop.permute.xlu0 %289
        %292 = vset.pattern.permute.xlu0 1
        %293 = vperm.xlu0 %292, %v257
        %v294 = vpop.permute.xlu0 %293
        %296 = vset.pattern.permute.xlu0 1
        %297 = vperm.xlu0 %296, %v258
        %v298 = vpop.permute.xlu0 %297
        %v300 = vperm.slane %v254, 1
        %v301 = vmul.f32 %v286, %v300
        %v302 = vmul.f32 %v290, %v300
        %v303 = vmul.f32 %v294, %v300
        %v304 = vmul.f32 %v298, %v300
        %v305 = vadd.f32 %v280, %v301
        %v306 = vadd.f32 %v281, %v302
        %v307 = vadd.f32 %v282, %v303
        %v308 = vadd.f32 %v283, %v304
        %309 = vset.pattern.permute.xlu0 2
        %310 = vperm.xlu0 %309, %v255
        %v311 = vpop.permute.xlu0 %310
        %313 = vset.pattern.permute.xlu0 2
        %314 = vperm.xlu0 %313, %v256
        %v315 = vpop.permute.xlu0 %314
        %317 = vset.pattern.permute.xlu0 2
        %318 = vperm.xlu0 %317, %v257
        %v319 = vpop.permute.xlu0 %318
        %321 = vset.pattern.permute.xlu0 2
        %322 = vperm.xlu0 %321, %v258
        %v323 = vpop.permute.xlu0 %322
        %v325 = vperm.slane %v254, 2
        %v326 = vmul.f32 %v311, %v325
        %v327 = vmul.f32 %v315, %v325
        %v328 = vmul.f32 %v319, %v325
        %v329 = vmul.f32 %v323, %v325
        %v330 = vadd.f32 %v305, %v326
        %v331 = vadd.f32 %v306, %v327
        %v332 = vadd.f32 %v307, %v328
        %v333 = vadd.f32 %v308, %v329
        %v334 = vld [vmem:[%s2] sm:$0xff]
        %v335 = vld [vmem:[%s2 + $0x8] sm:$0xff]
        %v336 = vld [vmem:[%s2 + $0x10] sm:$0xff]
        %v337 = vld [vmem:[%s2 + $0x18] sm:$0xff]
        %339 = vset.pattern.permute.xlu0 0
        %340 = vperm.xlu0 %339, %v334
        %v341 = vpop.permute.xlu0 %340
        %344 = vset.pattern.permute.xlu0 0
        %345 = vperm.xlu0 %344, %v335
        %v346 = vpop.permute.xlu0 %345
        %349 = vset.pattern.permute.xlu0 0
        %350 = vperm.xlu0 %349, %v336
        %v351 = vpop.permute.xlu0 %350
        %354 = vset.pattern.permute.xlu0 0
        %355 = vperm.xlu0 %354, %v337
        %v356 = vpop.permute.xlu0 %355
        %v358 = vadd.f32 %v330, %v341
        %v359 = vadd.f32 %v331, %v346
        %v360 = vadd.f32 %v332, %v351
        %v361 = vadd.f32 %v333, %v356
        %v362 = vmax.f32 %v358, 0.0
        %v363 = vmax.f32 %v359, 0.0
        %v364 = vmax.f32 %v360, 0.0
        %v365 = vmax.f32 %v361, 0.0
        %v366 = vld [vmem:[#allocation2] sm:$0xff]
        %v367 = vld [vmem:[#allocation2 + $0x8] sm:$0xff]
        %v368 = vld [vmem:[#allocation2 + $0x10] sm:$0xff]
        %v369 = vld [vmem:[#allocation2 + $0x18] sm:$0xff]
        %370 = vadd.xlane.f32.xlu0 %v362
        %v371 = vpop.xlane.xlu0 %370
        %372 = vadd.xlane.f32.xlu0 %v363
        %v373 = vpop.xlane.xlu0 %372
        %374 = vadd.xlane.f32.xlu0 %v364
        %v375 = vpop.xlane.xlu0 %374
        %376 = vadd.xlane.f32.xlu0 %v365
        %v377 = vpop.xlane.xlu0 %376
        %v378 = vadd.f32 %v366, %v371
        %v379 = vadd.f32 %v367, %v373
        %v380 = vadd.f32 %v368, %v375
        %v381 = vadd.f32 %v369, %v377
        %vm382 = vcmask 7168
        %383 = vst.msk [vmem:[#allocation2] sm:$0xff] %vm382, %v378
        %384 = vst.msk [vmem:[#allocation2 + $0x8] sm:$0xff] %vm382, %v379
        %385 = vst.msk [vmem:[#allocation2 + $0x10] sm:$0xff] %vm382, %v380
        %386 = vst.msk [vmem:[#allocation2 + $0x18] sm:$0xff] %vm382, %v381
        %p387 = scmp.eq.s32.totalorder %s24, 1
        // Predicated region
        $region45: #{tpu_custom_call.1} parent=39 // pred_check
          %p388 = pneg %p387
        $region46: #{tpu_custom_call.1} parent=39 // pred_check_branch
          %390 = sbr.rel (%p388) target = $region48
        $region47: #{tpu_custom_call.1} parent=39 // pred_region
          %v391 = vld [vmem:[#allocation2] sm:$0xff]
          %v392 = vld [vmem:[#allocation2 + $0x8] sm:$0xff]
          %v393 = vld [vmem:[#allocation2 + $0x10] sm:$0xff]
          %v394 = vld [vmem:[#allocation2 + $0x18] sm:$0xff]
          %v395 = vld [vmem:[%s3] sm:$0xff]
          %v396 = vld [vmem:[%s3 + $0x8] sm:$0xff]
          %v397 = vld [vmem:[%s3 + $0x10] sm:$0xff]
          %v398 = vld [vmem:[%s3 + $0x18] sm:$0xff]
          %400 = vset.pattern.permute.xlu0 0
          %401 = vperm.xlu0 %400, %v391
          %v402 = vpop.permute.xlu0 %401
          %405 = vset.pattern.permute.xlu0 0
          %406 = vperm.xlu0 %405, %v392
          %v407 = vpop.permute.xlu0 %406
          %410 = vset.pattern.permute.xlu0 0
          %411 = vperm.xlu0 %410, %v393
          %v412 = vpop.permute.xlu0 %411
          %415 = vset.pattern.permute.xlu0 0
          %416 = vperm.xlu0 %415, %v394
          %v417 = vpop.permute.xlu0 %416
          %v419 = vmul.f32 %v402, %v395
          %v420 = vmul.f32 %v407, %v396
          %v421 = vmul.f32 %v412, %v397
          %v422 = vmul.f32 %v417, %v398
          %v423 = vadd.f32 %v419, %v420
          %v424 = vadd.f32 %v423, %v421
          %v425 = vadd.f32 %v424, %v422
          %v426 = vrot.slane %v425, 4
          %v427 = vadd.f32 %v425, %v426
          %v428 = vrot.slane %v427, 2
          %v429 = vadd.f32 %v427, %v428
          %v430 = vrot.slane %v429, 1
          %v431 = vadd.f32 %v429, %v430
          %v432 = vld [vmem:[%s4] sm:$0x1]
          %v433 = vadd.f32 %v431, %v432
          %434 = vst [vmem:[%s236] sm:$0x1] %v433
        $region48: #{tpu_custom_call.1} parent=39 // pred_fallthru
          _
        %s435 = sand.u32 %s151, 1
        %s436 = scalar_lea.sflag [#allocation4], %s435
        %s437 = sand.u32 %s151, 1
        %s438 = scalar_lea.vmem [#allocation3], %s437
        // Predicated region
        $region49: #{tpu_custom_call.1} parent=39 // pred_check
          %p439 = pneg %p161
        $region50: #{tpu_custom_call.1} parent=39 // pred_check_branch
          %441 = sbr.rel (%p439) target = $region52
        $region51: #{tpu_custom_call.1} parent=39 // pred_region
          %443 = vsyncadd %s436, 0
          %s444 = scalar_lea.hbm %s5, %s23
          %s446 = sshll.u32 %s438, 4
          %s447 = int_to_ptr.vmem [resolvable:$true] %s446
          %s448 = sshll.u32 %s444, 4
          %s449 = int_to_ptr.hbm [resolvable:$true] %s448
          %451 = dma.vmem_to_hbm [thread:$0]  %s447, 16, %s449, %s436
        $region52: #{tpu_custom_call.1} parent=39 // pred_fallthru
          _
      $region40: #{tpu_custom_call.1} parent=5 // pred_fallthru
        _
      %p452 = scmp.le.s32.totalorder 2, %s14
      // Predicated region
      $region53: #{tpu_custom_call.1} parent=5 // pred_check
        %p453 = pneg %p452
      $region54: #{tpu_custom_call.1} parent=5 // pred_check_branch
        %455 = sbr.rel (%p453) target = $region56
      $region55: #{tpu_custom_call.1} parent=5 // pred_region
        %s456 = ssub.s32 %s14, 2
        // Predicated region
        $region57: #{tpu_custom_call.1} parent=55 // pred_check
          %p457 = pneg %p167
        $region58: #{tpu_custom_call.1} parent=55 // pred_check_branch
          %459 = sbr.rel (%p457) target = $region60
        $region59: #{tpu_custom_call.1} parent=55 // pred_region
          %s460 = sand.u32 %s152, 1
          %s461 = scalar_lea.sflag [#allocation4], %s460
          %s462 = sand.u32 %s152, 1
          %s463 = scalar_lea.vmem [#allocation3], %s462
          %465 = dma.done %s461, 16
        $region60: #{tpu_custom_call.1} parent=55 // pred_fallthru
          _
      $region56: #{tpu_custom_call.1} parent=5 // pred_fallthru
        _
    $region6: #{tpu_custom_call.1} parent=1 // loop_footer
      %s18 = sadd.s32 1, %s14
    $region7: #{tpu_custom_call.1} parent=1 // loop_footer_branch
      %13 = sbr.rel target = $region3
    $region8: #{tpu_custom_call.1} parent=1 // loop_exit
      _
    %466 = vsyncpa [#allocation4], 1
    %s467 = scalar_lea.sflag [#allocation4], 1
    %468 = vsyncpa %s467, 1

</llo_original>
